<compile_context>
chip_gen: v7x
topology: tpu7x:2x2x1
jax: 0.10.0
libtpu: 0.0.40
codegen_flags: <defaults>
</compile_context>

<pallas_src>
import math

import jax
import jax.numpy as jnp
from jax.experimental import pallas as pl
from jax.experimental.pallas import tpu as pltpu

_LANE = 128
_MAX_TILE_ROWS = 2048   # (2048, 128) f32 block = 1 MiB per input per buffer
_NUM_SPLITS = 2         # leading "parallel" grid axis -> megacore sharding on v7x


def _make_counts_kernel(tile_rows, steps_per_split, num_blocks, n_valid):
    covered = _NUM_SPLITS * steps_per_split * tile_rows * _LANE
    needs_mask = covered != n_valid
    has_dup_steps = _NUM_SPLITS * steps_per_split > num_blocks

    if tile_rows % 8 == 0:
        def fold(v):
            # (tile_rows, 128) int32 -> (8, 128) per-lane partials: pure VPU vreg adds.
            return v.reshape(tile_rows // 8, 8, _LANE).sum(axis=0)
    else:
        def fold(v):
            # Tiny single-block case (rows not a multiple of 8): sublane-reduce into row 0.
            s = jnp.broadcast_to(v.sum(axis=0, keepdims=True), (8, _LANE))
            row8 = jax.lax.broadcasted_iota(jnp.int32, (8, _LANE), 0)
            return jnp.where(row8 == 0, s, 0)

    def kernel(pred_ref, label_ref, tp_ref, sp_ref, sr_ref):
        c = pl.program_id(0)   # split (parallel) axis
        i = pl.program_id(1)   # reduction (arbitrary) axis

        @pl.when(i == 0)
        def _():
            tp_ref[...] = jnp.zeros_like(tp_ref)
            sp_ref[...] = jnp.zeros_like(sp_ref)
            sr_ref[...] = jnp.zeros_like(sr_ref)

        # sigmoid(x) > 0.5  <=>  x > 0 ; compares stay in the native input dtype.
        pre = pred_ref[...] > 0.0
        real = label_ref[...] > 0.5

        if needs_mask:
            blk = c * steps_per_split + i
            eff_blk = jnp.minimum(blk, num_blocks - 1)
            row = jax.lax.broadcasted_iota(jnp.int32, (tile_rows, _LANE), 0)
            col = jax.lax.broadcasted_iota(jnp.int32, (tile_rows, _LANE), 1)
            gidx = (eff_blk * tile_rows + row) * _LANE + col
            valid = gidx < n_valid
            if has_dup_steps:
                valid = valid & (blk < num_blocks)
            pre = pre & valid
            real = real & valid

        tp_ref[...] += fold((pre & real).astype(jnp.int32))[None]
        sp_ref[...] += fold(pre.astype(jnp.int32))[None]
        sr_ref[...] += fold(real.astype(jnp.int32))[None]

    return kernel


def _to_lane2d(x):
    if not jnp.issubdtype(x.dtype, jnp.floating):
        x = x.astype(jnp.float32)
    flat = x.reshape(-1)
    rem = (-flat.shape[0]) % _LANE
    if rem:
        # Minimal tail pad (< 128 elements) only when numel % 128 != 0; padded
        # zeros are also excluded by the in-kernel validity mask.
        flat = jnp.pad(flat, (0, rem))
    return flat.reshape(-1, _LANE)


def confusion_matrix_forward(predict, label):
    """Reproduces ConfusionMatrix.forward(predict, label) -> (P, R, F1)."""
    if predict.shape != label.shape:
        raise Exception(
            f"predict shape {predict.shape} is different from label shape {label.shape}"
        )

    n_valid = int(math.prod(predict.shape))
    pred2d = _to_lane2d(predict)
    label2d = _to_lane2d(label)
    rows = pred2d.shape[0]

    tile_rows = rows if rows <= _MAX_TILE_ROWS else _MAX_TILE_ROWS
    num_blocks = -(-rows // tile_rows)
    steps_per_split = -(-num_blocks // _NUM_SPLITS)

    if _NUM_SPLITS * steps_per_split > num_blocks:
        # Rectangular grid has a few idle (duplicate) steps: clamp the block
        # index (stay in bounds) and zero their contribution inside the kernel.
        def in_map(c, i):
            return (jnp.minimum(c * steps_per_split + i, num_blocks - 1), 0)
    else:
        def in_map(c, i):
            return (c * steps_per_split + i, 0)

    def out_map(c, i):
        return (c, 0, 0)

    kernel = _make_counts_kernel(tile_rows, steps_per_split, num_blocks, n_valid)

    part_shape = jax.ShapeDtypeStruct((_NUM_SPLITS, 8, _LANE), jnp.int32)
    tp_p, sp_p, sr_p = pl.pallas_call(
        kernel,
        out_shape=(part_shape, part_shape, part_shape),
        grid_spec=pltpu.PrefetchScalarGridSpec(
            num_scalar_prefetch=0,
            grid=(_NUM_SPLITS, steps_per_split),
            in_specs=[
                pl.BlockSpec((tile_rows, _LANE), in_map),
                pl.BlockSpec((tile_rows, _LANE), in_map),
            ],
            out_specs=[
                pl.BlockSpec((1, 8, _LANE), out_map),
                pl.BlockSpec((1, 8, _LANE), out_map),
                pl.BlockSpec((1, 8, _LANE), out_map),
            ],
        ),
        compiler_params=pltpu.CompilerParams(
            dimension_semantics=("parallel", "arbitrary"),
        ),
    )(pred2d, label2d)

    # Final (tiny) cross-lane reduction in plain JAX; int32 keeps counts exact.
    TP = jnp.sum(tp_p)
    FP = jnp.sum(sp_p) - TP
    FN = jnp.sum(sr_p) - TP

    TPf = TP.astype(jnp.float32)
    FPf = FP.astype(jnp.float32)
    FNf = FN.astype(jnp.float32)
    eps = jnp.float32(1e-8)
    P = TPf / (TPf + FPf + eps)
    R = TPf / (TPf + FNf + eps)
    F1 = 2 * P * R / (P + R + eps)
    return P, R, F1


if __name__ == "__main__":
    key = jax.random.PRNGKey(0)
    k1, k2 = jax.random.split(key)

    # Small NCHW-shaped inputs consistent with a segmentation-style logit map.
    predict = jax.random.normal(k1, (2, 4, 16, 16), dtype=jnp.float32)
    label = (jax.random.uniform(k2, (2, 4, 16, 16)) > 0.5).astype(jnp.float32)

    P, R, F1 = confusion_matrix_forward(predict, label)
    jax.block_until_ready((P, R, F1))

    # Pure-JAX reference check (same semantics as the PyTorch forward).
    pre_ref = jax.nn.sigmoid(predict) > 0.5
    real_ref = label > 0.5
    TPr = jnp.sum(pre_ref & real_ref).astype(jnp.float32)
    FPr = jnp.sum(pre_ref).astype(jnp.float32) - TPr
    FNr = jnp.sum(real_ref).astype(jnp.float32) - TPr
    Pr = TPr / (TPr + FPr + 1e-8)
    Rr = TPr / (TPr + FNr + 1e-8)
    F1r = 2 * Pr * Rr / (Pr + Rr + 1e-8)

    assert jnp.allclose(P, Pr, atol=1e-6), (P, Pr)
    assert jnp.allclose(R, Rr, atol=1e-6), (R, Rr)
    assert jnp.allclose(F1, F1r, atol=1e-6), (F1, F1r)

    print("KERNEL_OK")
</pallas_src>

<mosaic_0001>
module attributes {stable_mosaic.version = 11 : i64} {
  func.func @kernel(%arg0: i32, %arg1: i32, %arg2: memref<16x128xf32, #tpu.memory_space<vmem>>, %arg3: memref<16x128xf32, #tpu.memory_space<vmem>>, %arg4: memref<1x8x128xi32, #tpu.memory_space<vmem>>, %arg5: memref<1x8x128xi32, #tpu.memory_space<vmem>>, %arg6: memref<1x8x128xi32, #tpu.memory_space<vmem>>) attributes {dimension_semantics = [#tpu.dimension_semantics<parallel>, #tpu.dimension_semantics<arbitrary>], iteration_bounds = array<i64: 2, 1>, scalar_prefetch = 0 : i64, scratch_operands = 0 : i64, tpu.core_type = #tpu.core_type<tc>, window_params = [{transform_indices = @transform_0, window_bounds = array<i64: 16, 128>}, {transform_indices = @transform_1, window_bounds = array<i64: 16, 128>}, {transform_indices = @transform_2, window_bounds = array<i64: 1, 8, 128>}, {transform_indices = @transform_3, window_bounds = array<i64: 1, 8, 128>}, {transform_indices = @transform_4, window_bounds = array<i64: 1, 8, 128>}]} {
    %c0_i32 = arith.constant 0 : i32
    %0 = arith.cmpi eq, %arg1, %c0_i32 : i32
    %1 = arith.extui %0 : i1 to i32
    %c0_i32_0 = arith.constant 0 : i32
    %2 = arith.cmpi ne, %1, %c0_i32_0 : i32
    scf.if %2 {
      %c0_i32_28 = arith.constant 0 : i32
      %49 = vector.broadcast %c0_i32_28 : i32 to vector<1x8x128xi32>
      %c0_29 = arith.constant 0 : index
      %c0_30 = arith.constant 0 : index
      %c0_31 = arith.constant 0 : index
      %50 = vector.load %arg4[%c0_29, %c0_30, %c0_31] : memref<1x8x128xi32, #tpu.memory_space<vmem>>, vector<1x8x128xi32>
      tpu.vector_store %arg4[%c0_29, %c0_30, %c0_31], %49 {strides = array<i32>} : memref<1x8x128xi32, #tpu.memory_space<vmem>>, vector<1x8x128xi32>,
      %c0_i32_32 = arith.constant 0 : i32
      %51 = vector.broadcast %c0_i32_32 : i32 to vector<1x8x128xi32>
      %c0_33 = arith.constant 0 : index
      %c0_34 = arith.constant 0 : index
      %c0_35 = arith.constant 0 : index
      %52 = vector.load %arg5[%c0_33, %c0_34, %c0_35] : memref<1x8x128xi32, #tpu.memory_space<vmem>>, vector<1x8x128xi32>
      tpu.vector_store %arg5[%c0_33, %c0_34, %c0_35], %51 {strides = array<i32>} : memref<1x8x128xi32, #tpu.memory_space<vmem>>, vector<1x8x128xi32>,
      %c0_i32_36 = arith.constant 0 : i32
      %53 = vector.broadcast %c0_i32_36 : i32 to vector<1x8x128xi32>
      %c0_37 = arith.constant 0 : index
      %c0_38 = arith.constant 0 : index
      %c0_39 = arith.constant 0 : index
      %54 = vector.load %arg6[%c0_37, %c0_38, %c0_39] : memref<1x8x128xi32, #tpu.memory_space<vmem>>, vector<1x8x128xi32>
      tpu.vector_store %arg6[%c0_37, %c0_38, %c0_39], %53 {strides = array<i32>} : memref<1x8x128xi32, #tpu.memory_space<vmem>>, vector<1x8x128xi32>,
    } else {
    }
    %c0 = arith.constant 0 : index
    %c0_1 = arith.constant 0 : index
    %3 = vector.load %arg2[%c0, %c0_1] : memref<16x128xf32, #tpu.memory_space<vmem>>, vector<16x128xf32>
    %cst = arith.constant 0.000000e+00 : f32
    %4 = vector.broadcast %cst : f32 to vector<16x128xf32>
    %5 = arith.cmpf ogt, %3, %4 : vector<16x128xf32>
    %c0_2 = arith.constant 0 : index
    %c0_3 = arith.constant 0 : index
    %6 = vector.load %arg3[%c0_2, %c0_3] : memref<16x128xf32, #tpu.memory_space<vmem>>, vector<16x128xf32>
    %cst_4 = arith.constant 5.000000e-01 : f32
    %7 = vector.broadcast %cst_4 : f32 to vector<16x128xf32>
    %8 = arith.cmpf ogt, %6, %7 : vector<16x128xf32>
    %c1_i32 = arith.constant 1 : i32
    %9 = arith.muli %arg0, %c1_i32 : i32
    %10 = arith.addi %9, %arg1 : i32
    %c0_i32_5 = arith.constant 0 : i32
    %11 = arith.minsi %10, %c0_i32_5 : i32
    %12 = tpu.iota {dimensions = array<i32: 0>} : vector<16x128xi32>
    %13 = tpu.iota {dimensions = array<i32: 1>} : vector<16x128xi32>
    %c16_i32 = arith.constant 16 : i32
    %14 = arith.muli %11, %c16_i32 : i32
    %15 = vector.broadcast %14 : i32 to vector<16x128xi32>
    %16 = arith.addi %15, %12 : vector<16x128xi32>
    %c128_i32 = arith.constant 128 : i32
    %17 = vector.broadcast %c128_i32 : i32 to vector<16x128xi32>
    %18 = arith.muli %16, %17 : vector<16x128xi32>
    %19 = arith.addi %18, %13 : vector<16x128xi32>
    %c2048_i32 = arith.constant 2048 : i32
    %20 = vector.broadcast %c2048_i32 : i32 to vector<16x128xi32>
    %21 = arith.cmpi slt, %19, %20 : vector<16x128xi32>
    %c1_i32_6 = arith.constant 1 : i32
    %22 = arith.cmpi slt, %10, %c1_i32_6 : i32
    %23 = vector.broadcast %22 : i1 to vector<16x128xi1>
    %24 = arith.andi %21, %23 : vector<16x128xi1>
    %25 = arith.andi %5, %24 : vector<16x128xi1>
    %26 = arith.andi %8, %24 : vector<16x128xi1>
    %c0_7 = arith.constant 0 : index
    %c0_8 = arith.constant 0 : index
    %c0_9 = arith.constant 0 : index
    %27 = vector.load %arg4[%c0_7, %c0_8, %c0_9] : memref<1x8x128xi32, #tpu.memory_space<vmem>>, vector<1x8x128xi32>
    %28 = arith.andi %25, %26 : vector<16x128xi1>
    %29 = arith.extui %28 : vector<16x128xi1> to vector<16x128xi32>
    %30 = vector.shape_cast %29 : vector<16x128xi32> to vector<2x8x128xi32>
    %cst_10 = arith.constant dense<0> : vector<8x128xi32>
    %31 = vector.multi_reduction <add>, %30, %cst_10 [0] : vector<2x8x128xi32> to vector<8x128xi32>
    %32 = vector.shape_cast %31 : vector<8x128xi32> to vector<1x8x128xi32>
    %33 = arith.addi %27, %32 : vector<1x8x128xi32>
    %c0_11 = arith.constant 0 : index
    %c0_12 = arith.constant 0 : index
    %c0_13 = arith.constant 0 : index
    %34 = vector.load %arg4[%c0_11, %c0_12, %c0_13] : memref<1x8x128xi32, #tpu.memory_space<vmem>>, vector<1x8x128xi32>
    tpu.vector_store %arg4[%c0_11, %c0_12, %c0_13], %33 {strides = array<i32>} : memref<1x8x128xi32, #tpu.memory_space<vmem>>, vector<1x8x128xi32>,
    %c0_14 = arith.constant 0 : index
    %c0_15 = arith.constant 0 : index
    %c0_16 = arith.constant 0 : index
    %35 = vector.load %arg5[%c0_14, %c0_15, %c0_16] : memref<1x8x128xi32, #tpu.memory_space<vmem>>, vector<1x8x128xi32>
    %36 = arith.extui %25 : vector<16x128xi1> to vector<16x128xi32>
    %37 = vector.shape_cast %36 : vector<16x128xi32> to vector<2x8x128xi32>
    %cst_17 = arith.constant dense<0> : vector<8x128xi32>
    %38 = vector.multi_reduction <add>, %37, %cst_17 [0] : vector<2x8x128xi32> to vector<8x128xi32>
    %39 = vector.shape_cast %38 : vector<8x128xi32> to vector<1x8x128xi32>
    %40 = arith.addi %35, %39 : vector<1x8x128xi32>
    %c0_18 = arith.constant 0 : index
    %c0_19 = arith.constant 0 : index
    %c0_20 = arith.constant 0 : index
    %41 = vector.load %arg5[%c0_18, %c0_19, %c0_20] : memref<1x8x128xi32, #tpu.memory_space<vmem>>, vector<1x8x128xi32>
    tpu.vector_store %arg5[%c0_18, %c0_19, %c0_20], %40 {strides = array<i32>} : memref<1x8x128xi32, #tpu.memory_space<vmem>>, vector<1x8x128xi32>,
    %c0_21 = arith.constant 0 : index
    %c0_22 = arith.constant 0 : index
    %c0_23 = arith.constant 0 : index
    %42 = vector.load %arg6[%c0_21, %c0_22, %c0_23] : memref<1x8x128xi32, #tpu.memory_space<vmem>>, vector<1x8x128xi32>
    %43 = arith.extui %26 : vector<16x128xi1> to vector<16x128xi32>
    %44 = vector.shape_cast %43 : vector<16x128xi32> to vector<2x8x128xi32>
    %cst_24 = arith.constant dense<0> : vector<8x128xi32>
    %45 = vector.multi_reduction <add>, %44, %cst_24 [0] : vector<2x8x128xi32> to vector<8x128xi32>
    %46 = vector.shape_cast %45 : vector<8x128xi32> to vector<1x8x128xi32>
    %47 = arith.addi %42, %46 : vector<1x8x128xi32>
    %c0_25 = arith.constant 0 : index
    %c0_26 = arith.constant 0 : index
    %c0_27 = arith.constant 0 : index
    %48 = vector.load %arg6[%c0_25, %c0_26, %c0_27] : memref<1x8x128xi32, #tpu.memory_space<vmem>>, vector<1x8x128xi32>
    tpu.vector_store %arg6[%c0_25, %c0_26, %c0_27], %47 {strides = array<i32>} : memref<1x8x128xi32, #tpu.memory_space<vmem>>, vector<1x8x128xi32>,
    return
  }
  func.func @transform_0(%arg0: i32, %arg1: i32) -> (i32, i32) {
    %c1_i32 = arith.constant 1 : i32
    %0 = arith.muli %arg0, %c1_i32 : i32
    %1 = arith.addi %0, %arg1 : i32
    %c0_i32 = arith.constant 0 : i32
    %2 = arith.minsi %1, %c0_i32 : i32
    %c0_i32_0 = arith.constant 0 : i32
    %c0_i32_1 = arith.constant 0 : i32
    return %2, %c0_i32_0 : i32, i32
  }
  func.func @transform_1(%arg0: i32, %arg1: i32) -> (i32, i32) {
    %c1_i32 = arith.constant 1 : i32
    %0 = arith.muli %arg0, %c1_i32 : i32
    %1 = arith.addi %0, %arg1 : i32
    %c0_i32 = arith.constant 0 : i32
    %2 = arith.minsi %1, %c0_i32 : i32
    %c0_i32_0 = arith.constant 0 : i32
    %c0_i32_1 = arith.constant 0 : i32
    return %2, %c0_i32_0 : i32, i32
  }
  func.func @transform_2(%arg0: i32, %arg1: i32) -> (i32, i32, i32) {
    %c0_i32 = arith.constant 0 : i32
    %c0_i32_0 = arith.constant 0 : i32
    %c0_i32_1 = arith.constant 0 : i32
    return %arg0, %c0_i32, %c0_i32_0 : i32, i32, i32
  }
  func.func @transform_3(%arg0: i32, %arg1: i32) -> (i32, i32, i32) {
    %c0_i32 = arith.constant 0 : i32
    %c0_i32_0 = arith.constant 0 : i32
    %c0_i32_1 = arith.constant 0 : i32
    return %arg0, %c0_i32, %c0_i32_0 : i32, i32, i32
  }
  func.func @transform_4(%arg0: i32, %arg1: i32) -> (i32, i32, i32) {
    %c0_i32 = arith.constant 0 : i32
    %c0_i32_0 = arith.constant 0 : i32
    %c0_i32_1 = arith.constant 0 : i32
    return %arg0, %c0_i32, %c0_i32_0 : i32, i32, i32
  }
}

</mosaic_0001>

<llo_original>
// kernel: tpu_custom_call.1
$region0: #{tpu_custom_call.1}
  #allocation0 [shape = 'u32[]', space=smem, size = 0x4, offset = 0x4, fixed_abs, tag = 'smem constant byte address 0x4 - core index']
  #allocation1 [shape = 'u32[144,128]{1,0:T(1,128)}', space=vmem, size = 0x12000, scoped, tag = 'internal scratch']
  %s0 = inlined_call_operand.hbm [shape: f32[16,128], index: 0, kind: input, shape index: {}]
  %s1 = inlined_call_operand.hbm [shape: f32[16,128], index: 1, kind: input, shape index: {}]
  %s2 = inlined_call_operand.hbm [shape: s32[2,8,128], index: 2, kind: output, shape index: {0}]
  %s3 = inlined_call_operand.hbm [shape: s32[2,8,128], index: 3, kind: output, shape index: {1}]
  %s4 = inlined_call_operand.hbm [shape: s32[2,8,128], index: 4, kind: output, shape index: {2}]
  %5 = xla_tuple %s2, %s3, %s4
  %s6 = sld [smem:[#allocation0]]
  $region69: #{tpu_custom_call.1} parent=0
    _
  %s8 = ssub.s32 1, %s6
  %s9 = scalar_select 0, %s8, %s6
  $region1: #{tpu_custom_call.1} parent=0
    #allocation2 [shape = 'u8[16384]{0}', space=vmem, size = 0x4000, scoped, tag = 'input window, operand 0']
    #allocation3 [shape = 's32[2]{0}', space=sflag, size = 0x8, scoped, tag = 'scoped memory for tpu_custom_call.1']
    #allocation4 [shape = 's32[2]{0}', space=sflag, size = 0x8, scoped, tag = 'scoped memory for tpu_custom_call.1']
    #allocation5 [shape = 'u8[16384]{0}', space=vmem, size = 0x4000, scoped, tag = 'input window, operand 1']
    #allocation6 [shape = 's32[2]{0}', space=sflag, size = 0x8, scoped, tag = 'scoped memory for tpu_custom_call.1']
    #allocation7 [shape = 'u8[8192]{0}', space=vmem, size = 0x2000, scoped, tag = 'output window, operand 0']
    #allocation8 [shape = 'u8[8192]{0}', space=vmem, size = 0x2000, scoped, tag = 'output window, operand 1']
    #allocation9 [shape = 's32[2]{0}', space=sflag, size = 0x8, scoped, tag = 'scoped memory for tpu_custom_call.1']
    #allocation10 [shape = 'u8[8192]{0}', space=vmem, size = 0x2000, scoped, tag = 'output window, operand 2']
    %10 = vsyncpa [#allocation3], 0
    %s11 = scalar_lea.sflag [#allocation3], 1
    %12 = vsyncpa %s11, 0
    %13 = vsyncpa [#allocation6], 0
    %s14 = scalar_lea.sflag [#allocation6], 1
    %15 = vsyncpa %s14, 0
    %16 = vsyncpa [#allocation4], 0
    %s17 = scalar_lea.sflag [#allocation4], 1
    %18 = vsyncpa %s17, 0
    %19 = vsyncpa [#allocation9], 0
    %s20 = scalar_lea.sflag [#allocation9], 1
    %21 = vsyncpa %s20, 0
    loop: start=0, step=1, limit=4
    $region2: #{tpu_custom_call.1} parent=1 // loop_pre_header
      _
    $region3: #{tpu_custom_call.1} parent=1 // loop_header
      %s23 = sphi 0, %s27
      %p24 = scmp.ge.s32.totalorder %s23, 4
      %s30 = sphi 0, %s42
      %s31 = sphi 0, %s38
      %s32 = sphi 0, %s30
      %s33 = sphi 0, %s31
      %s34 = sphi 0, %s32
      %s35 = sphi 0, %s33
      %s51 = sphi 0, %s53
      %s54 = sphi 0, %s51
      %s55 = sphi 0, %s54
      %s71 = sphi 0, %s55
      %s83 = sphi 0, %s85
      %s86 = sphi 0, %s83
      %s87 = sphi 0, %s86
      %s103 = sphi 0, %s87
      %s109 = sphi 0, %s111
      %s112 = sphi 0, %s109
      %s113 = sphi 0, %s112
      %s129 = sphi 0, %s113
      %s135 = sphi 0, %s137
      %s138 = sphi 0, %s135
      %s139 = sphi 0, %s138
      %s155 = sphi 0, %s139
      %s161 = sphi 0, %s163
      %s164 = sphi 0, %s161
      %s165 = sphi 0, %s164
      %s181 = sphi 0, %s165
    $region4: #{tpu_custom_call.1} parent=1 // loop_header_branch
      %26 = sbr.rel (%p24) target = $region8
    $region5: #{tpu_custom_call.1} parent=1 // loop_body
      %s28 = ssub.s32 %s23, 1
      %s29 = ssub.s32 %s23, 2
      %s36 = sadd.s32 1, %s31
      %p37 = scmp.ge.s32.totalorder %s36, 1
      %s38 = scalar_select %p37, 0, %s36
      %s39 = sadd.s32 1, %s30
      %s40 = scalar_select %p37, %s39, %s30
      %p41 = scmp.ge.s32.totalorder %s40, 2
      %s42 = scalar_select %p41, 0, %s40
      %s43 = sadd.s32 %s30, %s31
      %p44 = scmp.lt.s32.totalorder %s43, 0
      %s45 = scalar_select %p44, %s43, 0
      %s46 = sadd.s32 %s42, %s38
      %p47 = scmp.lt.s32.totalorder %s46, 0
      %s48 = scalar_select %p47, %s46, 0
      %s49 = ssub.s32 %s45, %s48
      %p50 = scmp.eq.s32.totalorder %s49, 0
      %s52 = sadd.s32 %s51, 1
      %s53 = scalar_select %p50, %s51, %s52
      %p56 = pneg %p50
      %p57 = scmp.eq.s32.totalorder %s23, 1
      %p58 = por %p56, %p57
      %p59 = scmp.ne.s32.totalorder %s51, %s54
      %p60 = scmp.eq.s32.totalorder %s23, 0
      %p61 = por %p59, %p60
      %p62 = scmp.ne.s32.totalorder %s51, %s54
      %p63 = scmp.eq.s32.totalorder %s28, 1
      %p64 = por %p62, %p63
      %p65 = scmp.ne.s32.totalorder %s54, %s55
      %p66 = scmp.eq.s32.totalorder %s28, 0
      %p67 = por %p65, %p66
      %p68 = scmp.ne.s32.totalorder %s54, %s55
      %p69 = scmp.eq.s32.totalorder %s29, 1
      %p70 = por %p68, %p69
      %p72 = scmp.ne.s32.totalorder %s55, %s71
      %p73 = scmp.eq.s32.totalorder %s29, 0
      %p74 = por %p72, %p73
      %s75 = sadd.s32 %s30, %s31
      %p76 = scmp.lt.s32.totalorder %s75, 0
      %s77 = scalar_select %p76, %s75, 0
      %s78 = sadd.s32 %s42, %s38
      %p79 = scmp.lt.s32.totalorder %s78, 0
      %s80 = scalar_select %p79, %s78, 0
      %s81 = ssub.s32 %s77, %s80
      %p82 = scmp.eq.s32.totalorder %s81, 0
      %s84 = sadd.s32 %s83, 1
      %s85 = scalar_select %p82, %s83, %s84
      %p88 = pneg %p82
      %p89 = scmp.eq.s32.totalorder %s23, 1
      %p90 = por %p88, %p89
      %p91 = scmp.ne.s32.totalorder %s83, %s86
      %p92 = scmp.eq.s32.totalorder %s23, 0
      %p93 = por %p91, %p92
      %p94 = scmp.ne.s32.totalorder %s83, %s86
      %p95 = scmp.eq.s32.totalorder %s28, 1
      %p96 = por %p94, %p95
      %p97 = scmp.ne.s32.totalorder %s86, %s87
      %p98 = scmp.eq.s32.totalorder %s28, 0
      %p99 = por %p97, %p98
      %p100 = scmp.ne.s32.totalorder %s86, %s87
      %p101 = scmp.eq.s32.totalorder %s29, 1
      %p102 = por %p100, %p101
      %p104 = scmp.ne.s32.totalorder %s87, %s103
      %p105 = scmp.eq.s32.totalorder %s29, 0
      %p106 = por %p104, %p105
      %s107 = ssub.s32 %s30, %s42
      %p108 = scmp.eq.s32.totalorder %s107, 0
      %s110 = sadd.s32 %s109, 1
      %s111 = scalar_select %p108, %s109, %s110
      %p114 = pneg %p108
      %p115 = scmp.eq.s32.totalorder %s23, 1
      %p116 = por %p114, %p115
      %p117 = scmp.ne.s32.totalorder %s109, %s112
      %p118 = scmp.eq.s32.totalorder %s23, 0
      %p119 = por %p117, %p118
      %p120 = scmp.ne.s32.totalorder %s109, %s112
      %p121 = scmp.eq.s32.totalorder %s28, 1
      %p122 = por %p120, %p121
      %p123 = scmp.ne.s32.totalorder %s112, %s113
      %p124 = scmp.eq.s32.totalorder %s28, 0
      %p125 = por %p123, %p124
      %p126 = scmp.ne.s32.totalorder %s112, %s113
      %p127 = scmp.eq.s32.totalorder %s29, 1
      %p128 = por %p126, %p127
      %p130 = scmp.ne.s32.totalorder %s113, %s129
      %p131 = scmp.eq.s32.totalorder %s29, 0
      %p132 = por %p130, %p131
      %s133 = ssub.s32 %s30, %s42
      %p134 = scmp.eq.s32.totalorder %s133, 0
      %s136 = sadd.s32 %s135, 1
      %s137 = scalar_select %p134, %s135, %s136
      %p140 = pneg %p134
      %p141 = scmp.eq.s32.totalorder %s23, 1
      %p142 = por %p140, %p141
      %p143 = scmp.ne.s32.totalorder %s135, %s138
      %p144 = scmp.eq.s32.totalorder %s23, 0
      %p145 = por %p143, %p144
      %p146 = scmp.ne.s32.totalorder %s135, %s138
      %p147 = scmp.eq.s32.totalorder %s28, 1
      %p148 = por %p146, %p147
      %p149 = scmp.ne.s32.totalorder %s138, %s139
      %p150 = scmp.eq.s32.totalorder %s28, 0
      %p151 = por %p149, %p150
      %p152 = scmp.ne.s32.totalorder %s138, %s139
      %p153 = scmp.eq.s32.totalorder %s29, 1
      %p154 = por %p152, %p153
      %p156 = scmp.ne.s32.totalorder %s139, %s155
      %p157 = scmp.eq.s32.totalorder %s29, 0
      %p158 = por %p156, %p157
      %s159 = ssub.s32 %s30, %s42
      %p160 = scmp.eq.s32.totalorder %s159, 0
      %s162 = sadd.s32 %s161, 1
      %s163 = scalar_select %p160, %s161, %s162
      %p166 = pneg %p160
      %p167 = scmp.eq.s32.totalorder %s23, 1
      %p168 = por %p166, %p167
      %p169 = scmp.ne.s32.totalorder %s161, %s164
      %p170 = scmp.eq.s32.totalorder %s23, 0
      %p171 = por %p169, %p170
      %p172 = scmp.ne.s32.totalorder %s161, %s164
      %p173 = scmp.eq.s32.totalorder %s28, 1
      %p174 = por %p172, %p173
      %p175 = scmp.ne.s32.totalorder %s164, %s165
      %p176 = scmp.eq.s32.totalorder %s28, 0
      %p177 = por %p175, %p176
      %p178 = scmp.ne.s32.totalorder %s164, %s165
      %p179 = scmp.eq.s32.totalorder %s29, 1
      %p180 = por %p178, %p179
      %p182 = scmp.ne.s32.totalorder %s165, %s181
      %p183 = scmp.eq.s32.totalorder %s29, 0
      %p184 = por %p182, %p183
      %p185 = scmp.le.s32.totalorder 1, %s23
      %p186 = scmp.lt.s32.totalorder %s23, 3
      %p187 = pnand %p185, %p186
      %p188 = pneg %p187
      // Predicated region
      $region9: #{tpu_custom_call.1} parent=5 // pred_check
        _
      $region10: #{tpu_custom_call.1} parent=5 // pred_check_branch
        %190 = sbr.rel (%p187) target = $region12
      $region11: #{tpu_custom_call.1} parent=5 // pred_region
        %s191 = ssub.s32 %s23, 1
      $region12: #{tpu_custom_call.1} parent=5 // pred_fallthru
        _
      %p192 = scmp.lt.s32.totalorder %s23, 2
      // Predicated region
      $region13: #{tpu_custom_call.1} parent=5 // pred_check
        %p193 = pneg %p192
      $region14: #{tpu_custom_call.1} parent=5 // pred_check_branch
        %195 = sbr.rel (%p193) target = $region16
      $region15: #{tpu_custom_call.1} parent=5 // pred_region
        // Predicated region
        $region17: #{tpu_custom_call.1} parent=15 // pred_check
          %p196 = pneg %p61
        $region18: #{tpu_custom_call.1} parent=15 // pred_check_branch
          %198 = sbr.rel (%p196) target = $region20
        $region19: #{tpu_custom_call.1} parent=15 // pred_region
          %s199 = sand.u32 %s51, 1
          %s200 = scalar_lea.sflag [#allocation3], %s199
          %s201 = sand.u32 %s51, 1
          %s202 = smul.addr %s201, 16
          %s203 = scalar_lea.vmem [#allocation2], %s202
          %s204 = sadd.s32 %s30, %s31
          %p205 = scmp.lt.s32.totalorder %s204, 0
          %s206 = scalar_select %p205, %s204, 0
          %s207 = smul.u32 2, %s206
          %s209 = ssub.s32 256, 256
          %210 = vsyncadd %s200, %s209
          %s211 = smul.addr %s207, 128
          %s212 = scalar_lea.hbm %s0, %s211
          %s213 = sshll.u32 %s203, 4
          %s214 = int_to_ptr.vmem [resolvable:$true] %s213
          %219 = dma.hbm_to_vmem [thread:$0]  %s212, 256, %s214, %s200, 128, 128, 8
        $region20: #{tpu_custom_call.1} parent=15 // pred_fallthru
          _
        // Predicated region
        $region21: #{tpu_custom_call.1} parent=15 // pred_check
          %p220 = pneg %p93
        $region22: #{tpu_custom_call.1} parent=15 // pred_check_branch
          %222 = sbr.rel (%p220) target = $region24
        $region23: #{tpu_custom_call.1} parent=15 // pred_region
          %s223 = sand.u32 %s83, 1
          %s224 = scalar_lea.sflag [#allocation6], %s223
          %s225 = sand.u32 %s83, 1
          %s226 = smul.addr %s225, 16
          %s227 = scalar_lea.vmem [#allocation5], %s226
          %s228 = sadd.s32 %s30, %s31
          %p229 = scmp.lt.s32.totalorder %s228, 0
          %s230 = scalar_select %p229, %s228, 0
          %s231 = smul.u32 2, %s230
          %s233 = ssub.s32 256, 256
          %234 = vsyncadd %s224, %s233
          %s235 = smul.addr %s231, 128
          %s236 = scalar_lea.hbm %s1, %s235
          %s237 = sshll.u32 %s227, 4
          %s238 = int_to_ptr.vmem [resolvable:$true] %s237
          %243 = dma.hbm_to_vmem [thread:$0]  %s236, 256, %s238, %s224, 128, 128, 8
        $region24: #{tpu_custom_call.1} parent=15 // pred_fallthru
          _
      $region16: #{tpu_custom_call.1} parent=5 // pred_fallthru
        _
      %p244 = scmp.le.s32.totalorder 1, %s23
      %p245 = scmp.lt.s32.totalorder %s23, 3
      %p246 = pnand %p244, %p245
      %p247 = pneg %p246
      // Predicated region
      $region25: #{tpu_custom_call.1} parent=5 // pred_check
        _
      $region26: #{tpu_custom_call.1} parent=5 // pred_check_branch
        %249 = sbr.rel (%p246) target = $region28
      $region27: #{tpu_custom_call.1} parent=5 // pred_region
        %s250 = ssub.s32 %s23, 1
        %s251 = sand.u32 %s54, 1
        %s252 = scalar_lea.sflag [#allocation3], %s251
        %s253 = sand.u32 %s54, 1
        %s254 = smul.addr %s253, 16
        %s255 = scalar_lea.vmem [#allocation2], %s254
        // Predicated region
        $region29: #{tpu_custom_call.1} parent=27 // pred_check
          %p256 = pneg %p67
        $region30: #{tpu_custom_call.1} parent=27 // pred_check_branch
          %258 = sbr.rel (%p256) target = $region32
        $region31: #{tpu_custom_call.1} parent=27 // pred_region
          %259 = dma.done %s252, 256
        $region32: #{tpu_custom_call.1} parent=27 // pred_fallthru
          _
        %s260 = sand.u32 %s86, 1
        %s261 = scalar_lea.sflag [#allocation6], %s260
        %s262 = sand.u32 %s86, 1
        %s263 = smul.addr %s262, 16
        %s264 = scalar_lea.vmem [#allocation5], %s263
        // Predicated region
        $region33: #{tpu_custom_call.1} parent=27 // pred_check
          %p265 = pneg %p99
        $region34: #{tpu_custom_call.1} parent=27 // pred_check_branch
          %267 = sbr.rel (%p265) target = $region36
        $region35: #{tpu_custom_call.1} parent=27 // pred_region
          %268 = dma.done %s261, 256
        $region36: #{tpu_custom_call.1} parent=27 // pred_fallthru
          _
        %s269 = sand.u32 %s54, 1
        %s270 = scalar_lea.sflag [#allocation3], %s269
        %s271 = sand.u32 %s54, 1
        %s272 = smul.addr %s271, 16
        %s273 = scalar_lea.vmem [#allocation2], %s272
        %p274 = pneg %p67
        %p275 = pneg %p64
        %s276 = sand.u32 %s86, 1
        %s277 = scalar_lea.sflag [#allocation6], %s276
        %s278 = sand.u32 %s86, 1
        %s279 = smul.addr %s278, 16
        %s280 = scalar_lea.vmem [#allocation5], %s279
        %p281 = pneg %p99
        %p282 = pneg %p96
        %p283 = pneg %p125
        %p284 = pneg %p122
        %s285 = sand.u32 %s112, 1
        %s286 = scalar_lea.sflag [#allocation4], %s285
        %s287 = sand.u32 %s112, 1
        %s288 = smul.addr %s287, 8
        %s289 = scalar_lea.vmem [#allocation7], %s288
        %p290 = pneg %p151
        %p291 = pneg %p148
        %s292 = sand.u32 %s28, 1
        %s293 = scalar_lea.sflag [#allocation9], %s292
        %s294 = sand.u32 %s138, 1
        %s295 = smul.addr %s294, 8
        %s296 = scalar_lea.vmem [#allocation8], %s295
        %p297 = pneg %p177
        %p298 = pneg %p174
        %s299 = sand.u32 %s28, 1
        %s300 = scalar_lea.sflag [#allocation9], %s299
        %s301 = sand.u32 %s164, 1
        %s302 = smul.addr %s301, 8
        %s303 = scalar_lea.vmem [#allocation10], %s302
        %s304 = sadd.s32 %s32, %s33
        %p305 = scmp.lt.s32.totalorder %s304, 0
        %s306 = scalar_select %p305, %s304, 0
        %s307 = smul.u32 2, %s306
        %s308 = sadd.s32 %s32, %s33
        %p309 = scmp.lt.s32.totalorder %s308, 0
        %s310 = scalar_select %p309, %s308, 0
        %s311 = smul.u32 2, %s310
        %p312 = scmp.eq.s32.totalorder %s33, 0
        // Predicated region
        $region37: #{tpu_custom_call.1} parent=27 // pred_check
          %p313 = pneg %p312
        $region38: #{tpu_custom_call.1} parent=27 // pred_check_branch
          %315 = sbr.rel (%p313) target = $region40
        $region39: #{tpu_custom_call.1} parent=27 // pred_region
          %316 = vst [vmem:[%s289] sm:$0xff] 0
          %317 = vst [vmem:[%s296] sm:$0xff] 0
          %318 = vst [vmem:[%s303] sm:$0xff] 0
        $region40: #{tpu_custom_call.1} parent=27 // pred_fallthru
          _
        %v319 = vld [vmem:[%s255] sm:$0xff]
        %v320 = vld [vmem:[%s255 + $0x8] sm:$0xff]
        %vm321 = vcmp.gt.f32.partialorder %v319, 0.0
        %vm322 = vcmp.gt.f32.partialorder %v320, 0.0
        %v323 = vld [vmem:[%s264] sm:$0xff]
        %v324 = vld [vmem:[%s264 + $0x8] sm:$0xff]
        %vm325 = vcmp.gt.f32.partialorder %v323, 0.5
        %vm326 = vcmp.gt.f32.partialorder %v324, 0.5
        %s327 = sadd.s32 %s32, %s33
        %p328 = scmp.lt.s32.totalorder %s327, 0
        %s329 = scalar_select %p328, %s327, 0
        %v330 = vlaneseq
        %v331 = vshrl.u32 %v330, 7
        %v332 = vadd.s32 %v331, 8
        %v333 = vlaneseq
        %v334 = vand.u32 %v333, 127
        %s335 = smul.u32 %s329, 16
        %v336 = vstv %s335
        %v337 = vadd.s32 %v336, %v331
        %v338 = vadd.s32 %v336, %v332
        %v339 = vmul.u32 %v337, 128
        %v340 = vmul.u32 %v338, 128
        %v341 = vadd.s32 %v339, %v334
        %v342 = vadd.s32 %v340, %v334
        %vm343 = vcmp.lt.s32.totalorder %v341, 2048
        %vm344 = vcmp.lt.s32.totalorder %v342, 2048
        %p345 = scmp.lt.s32.totalorder %s327, 1
        %s346 = scalar_select %p345, 1, 0
        %v347 = vstv %s346
        %vm348 = vcmp.eq.s32.totalorder %v347, 1
        %vm349 = vmand %vm343, %vm348
        %vm350 = vmand %vm344, %vm348
        %vm351 = vmand %vm321, %vm349
        %vm352 = vmand %vm322, %vm350
        %vm353 = vmand %vm325, %vm349
        %vm354 = vmand %vm326, %vm350
        %v355 = vld [vmem:[%s289] sm:$0xff]
        %vm356 = vmand %vm351, %vm353
        %vm357 = vmand %vm352, %vm354
        %v358 = vsel %vm356, 1, 0
        %v359 = vsel %vm357, 1, 0
        %v360 = vadd.s32 %v358, %v359
        %v361 = vadd.s32 %v355, %v360
        %362 = vst [vmem:[%s289] sm:$0xff] %v361
        %v363 = vld [vmem:[%s296] sm:$0xff]
        %v364 = vsel %vm351, 1, 0
        %v365 = vsel %vm352, 1, 0
        %v366 = vadd.s32 %v364, %v365
        %v367 = vadd.s32 %v363, %v366
        %368 = vst [vmem:[%s296] sm:$0xff] %v367
        %v369 = vld [vmem:[%s303] sm:$0xff]
        %v370 = vsel %vm353, 1, 0
        %v371 = vsel %vm354, 1, 0
        %v372 = vadd.s32 %v370, %v371
        %v373 = vadd.s32 %v369, %v372
        %374 = vst [vmem:[%s303] sm:$0xff] %v373
        %s375 = sand.u32 %s112, 1
        %s376 = scalar_lea.sflag [#allocation4], %s375
        %s377 = sand.u32 %s112, 1
        %s378 = smul.addr %s377, 8
        %s379 = scalar_lea.vmem [#allocation7], %s378
        %s380 = sand.u32 %s28, 1
        %s381 = scalar_lea.sflag [#allocation9], %s380
        %s382 = sand.u32 %s138, 1
        %s383 = smul.addr %s382, 8
        %s384 = scalar_lea.vmem [#allocation8], %s383
        %s385 = sand.u32 %s28, 1
        %s386 = scalar_lea.sflag [#allocation9], %s385
        %s387 = sand.u32 %s164, 1
        %s388 = smul.addr %s387, 8
        %s389 = scalar_lea.vmem [#allocation10], %s388
        // Predicated region
        $region41: #{tpu_custom_call.1} parent=27 // pred_check
          %p390 = pneg %p122
        $region42: #{tpu_custom_call.1} parent=27 // pred_check_branch
          %392 = sbr.rel (%p390) target = $region44
        $region43: #{tpu_custom_call.1} parent=27 // pred_region
          %s394 = ssub.s32 128, 128
          %395 = vsyncadd %s376, %s394
          %s396 = smul.addr %s32, 128
          %s397 = scalar_lea.hbm %s2, %s396
          %s399 = sshll.u32 %s379, 4
          %s400 = int_to_ptr.vmem [resolvable:$true] %s399
          %402 = dma.vmem_to_hbm [thread:$0]  %s400, 128, %s397, %s376
        $region44: #{tpu_custom_call.1} parent=27 // pred_fallthru
          _
        // Predicated region
        $region45: #{tpu_custom_call.1} parent=27 // pred_check
          %p403 = pneg %p148
        $region46: #{tpu_custom_call.1} parent=27 // pred_check_branch
          %405 = sbr.rel (%p403) target = $region48
        $region47: #{tpu_custom_call.1} parent=27 // pred_region
          %s407 = ssub.s32 128, 128
          %408 = vsyncadd %s381, %s407
          %s409 = smul.addr %s32, 128
          %s410 = scalar_lea.hbm %s3, %s409
          %s412 = sshll.u32 %s384, 4
          %s413 = int_to_ptr.vmem [resolvable:$true] %s412
          %415 = dma.vmem_to_hbm [thread:$0]  %s413, 128, %s410, %s381
        $region48: #{tpu_custom_call.1} parent=27 // pred_fallthru
          _
        // Predicated region
        $region49: #{tpu_custom_call.1} parent=27 // pred_check
          %p416 = pneg %p174
        $region50: #{tpu_custom_call.1} parent=27 // pred_check_branch
          %418 = sbr.rel (%p416) target = $region52
        $region51: #{tpu_custom_call.1} parent=27 // pred_region
          %s420 = ssub.s32 128, 128
          %421 = vsyncadd %s386, %s420
          %s422 = smul.addr %s32, 128
          %s423 = scalar_lea.hbm %s4, %s422
          %s425 = sshll.u32 %s389, 4
          %s426 = int_to_ptr.vmem [resolvable:$true] %s425
          %428 = dma.vmem_to_hbm [thread:$0]  %s426, 128, %s423, %s386
        $region52: #{tpu_custom_call.1} parent=27 // pred_fallthru
          _
      $region28: #{tpu_custom_call.1} parent=5 // pred_fallthru
        _
      %p429 = scmp.le.s32.totalorder 2, %s23
      // Predicated region
      $region53: #{tpu_custom_call.1} parent=5 // pred_check
        %p430 = pneg %p429
      $region54: #{tpu_custom_call.1} parent=5 // pred_check_branch
        %432 = sbr.rel (%p430) target = $region56
      $region55: #{tpu_custom_call.1} parent=5 // pred_region
        %s433 = ssub.s32 %s23, 2
        // Predicated region
        $region57: #{tpu_custom_call.1} parent=55 // pred_check
          %p434 = pneg %p128
        $region58: #{tpu_custom_call.1} parent=55 // pred_check_branch
          %436 = sbr.rel (%p434) target = $region60
        $region59: #{tpu_custom_call.1} parent=55 // pred_region
          %s437 = sand.u32 %s113, 1
          %s438 = scalar_lea.sflag [#allocation4], %s437
          %s439 = sand.u32 %s113, 1
          %s440 = smul.addr %s439, 8
          %s441 = scalar_lea.vmem [#allocation7], %s440
          %442 = dma.done %s438, 128
        $region60: #{tpu_custom_call.1} parent=55 // pred_fallthru
          _
        // Predicated region
        $region61: #{tpu_custom_call.1} parent=55 // pred_check
          %p443 = pneg %p154
        $region62: #{tpu_custom_call.1} parent=55 // pred_check_branch
          %445 = sbr.rel (%p443) target = $region64
        $region63: #{tpu_custom_call.1} parent=55 // pred_region
          %s446 = sand.u32 %s29, 1
          %s447 = scalar_lea.sflag [#allocation9], %s446
          %s448 = sand.u32 %s139, 1
          %s449 = smul.addr %s448, 8
          %s450 = scalar_lea.vmem [#allocation8], %s449
          %451 = dma.done %s447, 128
        $region64: #{tpu_custom_call.1} parent=55 // pred_fallthru
          _
        // Predicated region
        $region65: #{tpu_custom_call.1} parent=55 // pred_check
          %p452 = pneg %p180
        $region66: #{tpu_custom_call.1} parent=55 // pred_check_branch
          %454 = sbr.rel (%p452) target = $region68
        $region67: #{tpu_custom_call.1} parent=55 // pred_region
          %s455 = sand.u32 %s29, 1
          %s456 = scalar_lea.sflag [#allocation9], %s455
          %s457 = sand.u32 %s165, 1
          %s458 = smul.addr %s457, 8
          %s459 = scalar_lea.vmem [#allocation10], %s458
          %460 = dma.done %s456, 128
        $region68: #{tpu_custom_call.1} parent=55 // pred_fallthru
          _
      $region56: #{tpu_custom_call.1} parent=5 // pred_fallthru
        _
    $region6: #{tpu_custom_call.1} parent=1 // loop_footer
      %s27 = sadd.s32 1, %s23
    $region7: #{tpu_custom_call.1} parent=1 // loop_footer_branch
      %22 = sbr.rel target = $region3
    $region8: #{tpu_custom_call.1} parent=1 // loop_exit
      _
    %461 = vsyncpa [#allocation3], 1
    %s462 = scalar_lea.sflag [#allocation3], 1
    %463 = vsyncpa %s462, 1
    %464 = vsyncpa [#allocation6], 1
    %s465 = scalar_lea.sflag [#allocation6], 1
    %466 = vsyncpa %s465, 1
    %467 = vsyncpa [#allocation4], 1
    %s468 = scalar_lea.sflag [#allocation4], 1
    %469 = vsyncpa %s468, 1
    %470 = vsyncpa [#allocation9], 1
    %s471 = scalar_lea.sflag [#allocation9], 1
    %472 = vsyncpa %s471, 1

</llo_original>
